<compile_context>
chip_gen: v7x
topology: tpu7x:2x2x1
jax: 0.10.0
libtpu: 0.0.40
codegen_flags: <defaults>
</compile_context>

<pallas_src>
from functools import partial

import jax
import jax.numpy as jnp
from jax import lax
from jax.experimental import pallas as pl
from jax.experimental.pallas import tpu as pltpu


# --------------------------------------------------------------------------
# Sizing helpers
# --------------------------------------------------------------------------
def _vmem_budget():
    """Returns (block-footprint budget bytes, vmem_limit_bytes), per TPU gen."""
    try:
        cap = int(pltpu.get_tpu_info().vmem_capacity_bytes)
    except Exception:
        cap = 64 * 1024 * 1024          # conservative fallback (v7x physical VMEM)
    limit = min(int(cap * 0.75), 100 * 1024 * 1024)   # ~48 MiB v7x, ~96 MiB v5e/v6e
    budget = int(limit * 0.6)                         # headroom for compiler scratch
    return budget, limit


def _largest_divisor_leq(n, cap):
    cap = max(1, min(n, cap))
    for d in range(cap, 0, -1):
        if n % d == 0:
            return d
    return 1


def _sum_over_l(x_ref, tb, c, l):
    """f32 sum of x_ref (tb, c, l) over the last axis.

    Accumulates 128-lane partial sums with VPU adds (tile-aligned ref slices,
    no relayout) and does a single cross-lane reduce at the end.
    """
    n_chunks, rem = l // 128, l % 128
    y = jnp.zeros((tb, c), jnp.float32)
    if n_chunks > 0:
        def body(k, a):
            off = pl.multiple_of(k * 128, 128)
            return a + x_ref[:, :, pl.ds(off, 128)].astype(jnp.float32)
        acc = lax.fori_loop(0, n_chunks, body,
                            jnp.zeros((tb, c, 128), jnp.float32),
                            unroll=min(n_chunks, 8))
        y = y + jnp.sum(acc, axis=-1)
    if rem:
        y = y + jnp.sum(
            x_ref[:, :, pl.ds(n_chunks * 128, rem)].astype(jnp.float32), axis=-1)
    return y


# --------------------------------------------------------------------------
# Fused single-pass kernel (primary path)
# --------------------------------------------------------------------------
def se1d_fused_kernel(x_ref, w1t_ref, b1_ref, w2t_ref, b2_ref, o_ref, *, inv_l):
    """One (TB, C, L) block: mean over L -> FC/ReLU/FC/sigmoid -> x * gate."""
    tb, c, l = x_ref.shape
    y = _sum_over_l(x_ref, tb, c, l) * inv_l                        # (TB, C) mean, f32
    h = jnp.dot(y, w1t_ref[...], preferred_element_type=jnp.float32) + b1_ref[...]
    h = jnp.maximum(h, 0.0)                                         # (TB, C_r)
    z = jnp.dot(h, w2t_ref[...], preferred_element_type=jnp.float32) + b2_ref[...]
    s = jax.nn.sigmoid(z)                                           # (TB, C)
    gate = s[:, :, None].astype(o_ref.dtype)                        # one small relayout/block
    o_ref[...] = (x_ref[...] * gate).astype(o_ref.dtype)


def _se1d_fused(x, w1t, b1_2d, w2t, b2_2d, tb, vmem_limit):
    B, C, L = x.shape
    n_b = B // tb
    return pl.pallas_call(
        partial(se1d_fused_kernel, inv_l=1.0 / L),
        out_shape=jax.ShapeDtypeStruct((B, C, L), x.dtype),
        grid=(n_b,),
        in_specs=[
            pl.BlockSpec((tb, C, L), lambda b: (b, 0, 0)),
            pl.BlockSpec(w1t.shape, lambda b: (0, 0)),
            pl.BlockSpec(b1_2d.shape, lambda b: (0, 0)),
            pl.BlockSpec(w2t.shape, lambda b: (0, 0)),
            pl.BlockSpec(b2_2d.shape, lambda b: (0, 0)),
        ],
        out_specs=pl.BlockSpec((tb, C, L), lambda b: (b, 0, 0)),
        compiler_params=pltpu.CompilerParams(
            dimension_semantics=("parallel",),
            vmem_limit_bytes=vmem_limit,
        ),
    )(x, w1t, b1_2d, w2t, b2_2d)


# --------------------------------------------------------------------------
# Two-pass fallback (rows too large for VMEM)
# --------------------------------------------------------------------------
def se1d_gate_kernel(x_ref, w1t_ref, b1_ref, w2t_ref, b2_ref, s_ref, acc_ref,
                     *, inv_l, l_total, tl, ragged):
    li = pl.program_id(1)

    @pl.when(li == 0)
    def _():
        acc_ref[...] = jnp.zeros_like(acc_ref)

    tb, c, _ = x_ref.shape
    if ragged:
        # Last L tile may extend past L: mask out-of-bounds lanes before summing.
        xv = x_ref[...].astype(jnp.float32)
        lane = lax.broadcasted_iota(jnp.int32, xv.shape, 2)
        xv = jnp.where(lane < (l_total - li * tl), xv, 0.0)
        acc_ref[...] += jnp.sum(xv, axis=-1)
    else:
        acc_ref[...] += _sum_over_l(x_ref, tb, c, tl)

    @pl.when(li == pl.num_programs(1) - 1)
    def _():
        y = acc_ref[...] * inv_l                                    # (1, C) mean
        h = jnp.dot(y, w1t_ref[...], preferred_element_type=jnp.float32) + b1_ref[...]
        h = jnp.maximum(h, 0.0)
        z = jnp.dot(h, w2t_ref[...], preferred_element_type=jnp.float32) + b2_ref[...]
        s_ref[...] = jax.nn.sigmoid(z)                              # (1, C)


def se1d_scale_kernel(x_ref, s_ref, o_ref):
    """o = x * s; s is (1, C, 1) so the broadcast over L is a cheap lane splat."""
    o_ref[...] = (x_ref[...] * s_ref[...].astype(x_ref.dtype)).astype(o_ref.dtype)


def _se1d_two_pass(x, w1t, b1_2d, w2t, b2_2d, budget, vmem_limit):
    B, C, L = x.shape
    C_r = w1t.shape[1]
    isz = x.dtype.itemsize
    # Size the L tile from the scale pass (2 x in + 2 x out double buffers).
    tl = max(128, (budget // (4 * C * isz)) // 128 * 128)
    tl = min(tl, max(128, (L // 128) * 128)) if L >= 128 else 128
    n_l = pl.cdiv(L, tl)
    ragged = (L % tl) != 0

    gate = pl.pallas_call(
        partial(se1d_gate_kernel, inv_l=1.0 / L, l_total=L, tl=tl, ragged=ragged),
        out_shape=jax.ShapeDtypeStruct((B, C), jnp.float32),
        grid=(B, n_l),
        in_specs=[
            pl.BlockSpec((1, C, tl), lambda b, l: (b, 0, l)),
            pl.BlockSpec((C, C_r), lambda b, l: (0, 0)),
            pl.BlockSpec((1, C_r), lambda b, l: (0, 0)),
            pl.BlockSpec((C_r, C), lambda b, l: (0, 0)),
            pl.BlockSpec((1, C), lambda b, l: (0, 0)),
        ],
        out_specs=pl.BlockSpec((1, C), lambda b, l: (b, 0)),
        scratch_shapes=[pltpu.VMEM((1, C), jnp.float32)],
        compiler_params=pltpu.CompilerParams(
            dimension_semantics=("parallel", "arbitrary"),
            vmem_limit_bytes=vmem_limit,
        ),
    )(x, w1t, b1_2d, w2t, b2_2d)

    gate3 = gate.reshape(B, C, 1)  # C on sublanes for the scale pass

    out = pl.pallas_call(
        se1d_scale_kernel,
        out_shape=jax.ShapeDtypeStruct((B, C, L), x.dtype),
        grid=(B, n_l),
        in_specs=[
            pl.BlockSpec((1, C, tl), lambda b, l: (b, 0, l)),
            pl.BlockSpec((1, C, 1), lambda b, l: (b, 0, 0)),
        ],
        out_specs=pl.BlockSpec((1, C, tl), lambda b, l: (b, 0, l)),
        compiler_params=pltpu.CompilerParams(
            dimension_semantics=("parallel", "parallel"),
            vmem_limit_bytes=vmem_limit,
        ),
    )(x, gate3)
    return out


# --------------------------------------------------------------------------
# Public wrapper
# --------------------------------------------------------------------------
def se1d_layer(x, w1, b1, w2, b2):
    """x: (B, C, L); w1: (C_r, C); b1: (C_r,); w2: (C, C_r); b2: (C,)."""
    B, C, L = x.shape
    C_r = w1.shape[0]

    # PyTorch Linear is y = x @ W.T + b -> pre-transpose once in the wrapper.
    w1t = jnp.transpose(w1).astype(jnp.float32)      # (C, C_r)
    w2t = jnp.transpose(w2).astype(jnp.float32)      # (C_r, C)
    b1_2d = b1.reshape(1, C_r).astype(jnp.float32)
    b2_2d = b2.reshape(1, C).astype(jnp.float32)

    budget, vmem_limit = _vmem_budget()
    row_bytes = C * L * x.dtype.itemsize
    max_tb = budget // (4 * row_bytes) if row_bytes > 0 else 0

    if max_tb >= 1:
        # Fused single-pass path: whole row(s) resident in VMEM (x read once).
        cap = max(1, B // 2) if B >= 2 else 1   # keep >= 2 grid steps for v7x megacore
        # TODO(synk): for B == 1 the fused grid has a single step, so one v7x
        # TensorCore idles; a per-half-L partial-sum split would recover it.
        tb = _largest_divisor_leq(B, min(max_tb, cap))
        return _se1d_fused(x, w1t, b1_2d, w2t, b2_2d, tb, vmem_limit)

    # Rows too big for VMEM: tiled two-pass fallback.
    return _se1d_two_pass(x, w1t, b1_2d, w2t, b2_2d, budget, vmem_limit)


def se1d_reference(x, w1, b1, w2, b2):
    """Pure-JAX reference mirroring the PyTorch forward."""
    y = jnp.mean(x, axis=-1)                           # (B, C)
    h = jnp.maximum(y @ w1.T + b1, 0.0)                # (B, C_r)
    s = jax.nn.sigmoid(h @ w2.T + b2)                  # (B, C)
    return x * s[:, :, None]


if __name__ == "__main__":
    # Small shapes consistent with the module: channel divisible by
    # reduction=16 -> C=32, C_r=2.  L=1024 gives lane-dense full-row blocks;
    # B=2 exercises the fused path with grid=(2,) (one row per parallel step).
    B, C, L = 2, 32, 1024
    reduction = 16
    C_r = C // reduction

    key = jax.random.PRNGKey(0)
    kx, kw1, kb1, kw2, kb2 = jax.random.split(key, 5)

    x = jax.random.normal(kx, (B, C, L), dtype=jnp.float32)
    w1 = jax.random.normal(kw1, (C_r, C), dtype=jnp.float32) * 0.1
    b1 = jax.random.normal(kb1, (C_r,), dtype=jnp.float32) * 0.1
    w2 = jax.random.normal(kw2, (C, C_r), dtype=jnp.float32) * 0.1
    b2 = jax.random.normal(kb2, (C,), dtype=jnp.float32) * 0.1

    out = jax.block_until_ready(se1d_layer(x, w1, b1, w2, b2))

    ref = se1d_reference(x, w1, b1, w2, b2)
    assert out.shape == (B, C, L)
    assert jnp.allclose(out, ref, atol=1e-5, rtol=1e-5), "mismatch vs reference"

    print("KERNEL_OK")
</pallas_src>

<mosaic_0001>
module attributes {stable_mosaic.version = 11 : i64} {
  func.func @se1d_fused_kernel(%arg0: i32, %arg1: memref<1x32x1024xf32, #tpu.memory_space<vmem>>, %arg2: memref<32x2xf32, #tpu.memory_space<vmem>>, %arg3: memref<1x2xf32, #tpu.memory_space<vmem>>, %arg4: memref<2x32xf32, #tpu.memory_space<vmem>>, %arg5: memref<1x32xf32, #tpu.memory_space<vmem>>, %arg6: memref<1x32x1024xf32, #tpu.memory_space<vmem>>) attributes {dimension_semantics = [#tpu.dimension_semantics<parallel>], iteration_bounds = array<i64: 2>, scalar_prefetch = 0 : i64, scratch_operands = 0 : i64, tpu.core_type = #tpu.core_type<tc>, window_params = [{transform_indices = @transform_0, window_bounds = array<i64: 1, 32, 1024>}, {pipeline_mode = #tpu.pipeline_mode<synchronous>, transform_indices = @transform_1, window_bounds = array<i64: 32, 2>}, {pipeline_mode = #tpu.pipeline_mode<synchronous>, transform_indices = @transform_2, window_bounds = array<i64: 1, 2>}, {pipeline_mode = #tpu.pipeline_mode<synchronous>, transform_indices = @transform_3, window_bounds = array<i64: 2, 32>}, {pipeline_mode = #tpu.pipeline_mode<synchronous>, transform_indices = @transform_4, window_bounds = array<i64: 1, 32>}, {transform_indices = @transform_5, window_bounds = array<i64: 1, 32, 1024>}]} {
    %cst = arith.constant 0.000000e+00 : f32
    %0 = vector.broadcast %cst : f32 to vector<1x32xf32>
    %cst_0 = arith.constant 0.000000e+00 : f32
    %1 = vector.broadcast %cst_0 : f32 to vector<1x32x128xf32>
    %c0_i32 = arith.constant 0 : i32
    %c128_i32 = arith.constant 128 : i32
    %2 = arith.muli %c0_i32, %c128_i32 : i32
    %3 = tpu.assume_multiple %2, 128 : i32
    %c0 = arith.constant 0 : index
    %c0_1 = arith.constant 0 : index
    %4 = arith.index_cast %3 : i32 to index
    %5 = vector.load %arg1[%c0, %c0_1, %4] : memref<1x32x1024xf32, #tpu.memory_space<vmem>>, vector<1x32x128xf32>
    %6 = arith.addf %1, %5 : vector<1x32x128xf32>
    %c1_i32 = arith.constant 1 : i32
    %c128_i32_2 = arith.constant 128 : i32
    %7 = arith.muli %c1_i32, %c128_i32_2 : i32
    %8 = tpu.assume_multiple %7, 128 : i32
    %c0_3 = arith.constant 0 : index
    %c0_4 = arith.constant 0 : index
    %9 = arith.index_cast %8 : i32 to index
    %10 = vector.load %arg1[%c0_3, %c0_4, %9] : memref<1x32x1024xf32, #tpu.memory_space<vmem>>, vector<1x32x128xf32>
    %11 = arith.addf %6, %10 : vector<1x32x128xf32>
    %c2_i32 = arith.constant 2 : i32
    %c128_i32_5 = arith.constant 128 : i32
    %12 = arith.muli %c2_i32, %c128_i32_5 : i32
    %13 = tpu.assume_multiple %12, 128 : i32
    %c0_6 = arith.constant 0 : index
    %c0_7 = arith.constant 0 : index
    %14 = arith.index_cast %13 : i32 to index
    %15 = vector.load %arg1[%c0_6, %c0_7, %14] : memref<1x32x1024xf32, #tpu.memory_space<vmem>>, vector<1x32x128xf32>
    %16 = arith.addf %11, %15 : vector<1x32x128xf32>
    %c3_i32 = arith.constant 3 : i32
    %c128_i32_8 = arith.constant 128 : i32
    %17 = arith.muli %c3_i32, %c128_i32_8 : i32
    %18 = tpu.assume_multiple %17, 128 : i32
    %c0_9 = arith.constant 0 : index
    %c0_10 = arith.constant 0 : index
    %19 = arith.index_cast %18 : i32 to index
    %20 = vector.load %arg1[%c0_9, %c0_10, %19] : memref<1x32x1024xf32, #tpu.memory_space<vmem>>, vector<1x32x128xf32>
    %21 = arith.addf %16, %20 : vector<1x32x128xf32>
    %c4_i32 = arith.constant 4 : i32
    %c128_i32_11 = arith.constant 128 : i32
    %22 = arith.muli %c4_i32, %c128_i32_11 : i32
    %23 = tpu.assume_multiple %22, 128 : i32
    %c0_12 = arith.constant 0 : index
    %c0_13 = arith.constant 0 : index
    %24 = arith.index_cast %23 : i32 to index
    %25 = vector.load %arg1[%c0_12, %c0_13, %24] : memref<1x32x1024xf32, #tpu.memory_space<vmem>>, vector<1x32x128xf32>
    %26 = arith.addf %21, %25 : vector<1x32x128xf32>
    %c5_i32 = arith.constant 5 : i32
    %c128_i32_14 = arith.constant 128 : i32
    %27 = arith.muli %c5_i32, %c128_i32_14 : i32
    %28 = tpu.assume_multiple %27, 128 : i32
    %c0_15 = arith.constant 0 : index
    %c0_16 = arith.constant 0 : index
    %29 = arith.index_cast %28 : i32 to index
    %30 = vector.load %arg1[%c0_15, %c0_16, %29] : memref<1x32x1024xf32, #tpu.memory_space<vmem>>, vector<1x32x128xf32>
    %31 = arith.addf %26, %30 : vector<1x32x128xf32>
    %c6_i32 = arith.constant 6 : i32
    %c128_i32_17 = arith.constant 128 : i32
    %32 = arith.muli %c6_i32, %c128_i32_17 : i32
    %33 = tpu.assume_multiple %32, 128 : i32
    %c0_18 = arith.constant 0 : index
    %c0_19 = arith.constant 0 : index
    %34 = arith.index_cast %33 : i32 to index
    %35 = vector.load %arg1[%c0_18, %c0_19, %34] : memref<1x32x1024xf32, #tpu.memory_space<vmem>>, vector<1x32x128xf32>
    %36 = arith.addf %31, %35 : vector<1x32x128xf32>
    %c7_i32 = arith.constant 7 : i32
    %c128_i32_20 = arith.constant 128 : i32
    %37 = arith.muli %c7_i32, %c128_i32_20 : i32
    %38 = tpu.assume_multiple %37, 128 : i32
    %c0_21 = arith.constant 0 : index
    %c0_22 = arith.constant 0 : index
    %39 = arith.index_cast %38 : i32 to index
    %40 = vector.load %arg1[%c0_21, %c0_22, %39] : memref<1x32x1024xf32, #tpu.memory_space<vmem>>, vector<1x32x128xf32>
    %41 = arith.addf %36, %40 : vector<1x32x128xf32>
    %c8_i32 = arith.constant 8 : i32
    %cst_23 = arith.constant dense<0.000000e+00> : vector<1x32xf32>
    %42 = vector.multi_reduction <add>, %41, %cst_23 [2] : vector<1x32x128xf32> to vector<1x32xf32>
    %43 = arith.addf %0, %42 : vector<1x32xf32>
    %cst_24 = arith.constant 9.765625E-4 : f32
    %44 = vector.broadcast %cst_24 : f32 to vector<1x32xf32>
    %45 = arith.mulf %43, %44 : vector<1x32xf32>
    %c0_25 = arith.constant 0 : index
    %c0_26 = arith.constant 0 : index
    %46 = vector.load %arg2[%c0_25, %c0_26] : memref<32x2xf32, #tpu.memory_space<vmem>>, vector<32x2xf32>
    %cst_27 = arith.constant dense<0.000000e+00> : vector<1x2xf32>
    %47 = tpu.matmul %45, %46, %cst_27 {dimension_numbers = #tpu.dot_dimension_numbers<[1], [0], [0], [1], [0, 0, 1, 1], [], []>} : vector<1x32xf32>, vector<32x2xf32>, vector<1x2xf32> -> vector<1x2xf32>
    %c0_28 = arith.constant 0 : index
    %c0_29 = arith.constant 0 : index
    %48 = vector.load %arg3[%c0_28, %c0_29] : memref<1x2xf32, #tpu.memory_space<vmem>>, vector<1x2xf32>
    %49 = arith.addf %47, %48 : vector<1x2xf32>
    %cst_30 = arith.constant 0.000000e+00 : f32
    %50 = vector.broadcast %cst_30 : f32 to vector<1x2xf32>
    %51 = arith.maximumf %49, %50 : vector<1x2xf32>
    %c0_31 = arith.constant 0 : index
    %c0_32 = arith.constant 0 : index
    %52 = vector.load %arg4[%c0_31, %c0_32] : memref<2x32xf32, #tpu.memory_space<vmem>>, vector<2x32xf32>
    %cst_33 = arith.constant dense<0.000000e+00> : vector<1x32xf32>
    %53 = tpu.matmul %51, %52, %cst_33 {dimension_numbers = #tpu.dot_dimension_numbers<[1], [0], [0], [1], [0, 0, 1, 1], [], []>} : vector<1x2xf32>, vector<2x32xf32>, vector<1x32xf32> -> vector<1x32xf32>
    %c0_34 = arith.constant 0 : index
    %c0_35 = arith.constant 0 : index
    %54 = vector.load %arg5[%c0_34, %c0_35] : memref<1x32xf32, #tpu.memory_space<vmem>>, vector<1x32xf32>
    %55 = arith.addf %53, %54 : vector<1x32xf32>
    %56 = arith.negf %55 : vector<1x32xf32>
    %57 = math.exp %56 : vector<1x32xf32>
    %cst_36 = arith.constant 1.000000e+00 : f32
    %58 = vector.broadcast %cst_36 : f32 to vector<1x32xf32>
    %59 = arith.addf %58, %57 : vector<1x32xf32>
    %60 = arith.divf %58, %59 : vector<1x32xf32>
    %61 = vector.shape_cast %60 : vector<1x32xf32> to vector<1x32x1xf32>
    %c0_37 = arith.constant 0 : index
    %c0_38 = arith.constant 0 : index
    %c0_39 = arith.constant 0 : index
    %62 = vector.load %arg1[%c0_37, %c0_38, %c0_39] : memref<1x32x1024xf32, #tpu.memory_space<vmem>>, vector<1x32x1024xf32>
    %63 = vector.broadcast %61 : vector<1x32x1xf32> to vector<1x32x1024xf32>
    %64 = arith.mulf %62, %63 : vector<1x32x1024xf32>
    %c0_40 = arith.constant 0 : index
    %c0_41 = arith.constant 0 : index
    %c0_42 = arith.constant 0 : index
    %65 = vector.load %arg6[%c0_40, %c0_41, %c0_42] : memref<1x32x1024xf32, #tpu.memory_space<vmem>>, vector<1x32x1024xf32>
    tpu.vector_store %arg6[%c0_40, %c0_41, %c0_42], %64 {strides = array<i32>} : memref<1x32x1024xf32, #tpu.memory_space<vmem>>, vector<1x32x1024xf32>,
    return
  }
  func.func @transform_0(%arg0: i32) -> (i32, i32, i32) {
    %c0_i32 = arith.constant 0 : i32
    %c0_i32_0 = arith.constant 0 : i32
    %c0_i32_1 = arith.constant 0 : i32
    return %arg0, %c0_i32, %c0_i32_0 : i32, i32, i32
  }
  func.func @transform_1(%arg0: i32) -> (i32, i32) {
    %c0_i32 = arith.constant 0 : i32
    %c0_i32_0 = arith.constant 0 : i32
    %c0_i32_1 = arith.constant 0 : i32
    return %c0_i32, %c0_i32_0 : i32, i32
  }
  func.func @transform_2(%arg0: i32) -> (i32, i32) {
    %c0_i32 = arith.constant 0 : i32
    %c0_i32_0 = arith.constant 0 : i32
    %c0_i32_1 = arith.constant 0 : i32
    return %c0_i32, %c0_i32_0 : i32, i32
  }
  func.func @transform_3(%arg0: i32) -> (i32, i32) {
    %c0_i32 = arith.constant 0 : i32
    %c0_i32_0 = arith.constant 0 : i32
    %c0_i32_1 = arith.constant 0 : i32
    return %c0_i32, %c0_i32_0 : i32, i32
  }
  func.func @transform_4(%arg0: i32) -> (i32, i32) {
    %c0_i32 = arith.constant 0 : i32
    %c0_i32_0 = arith.constant 0 : i32
    %c0_i32_1 = arith.constant 0 : i32
    return %c0_i32, %c0_i32_0 : i32, i32
  }
  func.func @transform_5(%arg0: i32) -> (i32, i32, i32) {
    %c0_i32 = arith.constant 0 : i32
    %c0_i32_0 = arith.constant 0 : i32
    %c0_i32_1 = arith.constant 0 : i32
    return %arg0, %c0_i32, %c0_i32_0 : i32, i32, i32
  }
}

</mosaic_0001>

<llo_original>
// kernel: tpu_custom_call.1
$region0: #{tpu_custom_call.1}
  #allocation0 [shape = 'u32[]', space=smem, size = 0x4, offset = 0x4, fixed_abs, tag = 'smem constant byte address 0x4 - core index']
  #allocation1 [shape = 'u32[144,128]{1,0:T(1,128)}', space=vmem, size = 0x12000, scoped, tag = 'internal scratch']
  %s0 = inlined_call_operand.hbm [shape: f32[2,32,1024], index: 0, kind: input, shape index: {}]
  %s1 = inlined_call_operand.vmem [shape: f32[32,2], index: 1, kind: input, shape index: {}]
  %s2 = inlined_call_operand.vmem [shape: f32[1,2], index: 2, kind: input, shape index: {}]
  %s3 = inlined_call_operand.vmem [shape: f32[2,32], index: 3, kind: input, shape index: {}]
  %s4 = inlined_call_operand.vmem [shape: f32[1,32], index: 4, kind: input, shape index: {}]
  %s5 = inlined_call_operand.hbm [shape: f32[2,32,1024], index: 5, kind: output, shape index: {}]
  %s6 = sld [smem:[#allocation0]]
  $region57: #{tpu_custom_call.1} parent=0
    _
  %s8 = ssub.s32 1, %s6
  %s9 = scalar_select 0, %s8, %s6
  $region1: #{tpu_custom_call.1} parent=0
    #allocation2 [shape = 'u8[262144]{0}', space=vmem, size = 0x40000, scoped, tag = 'input window, operand 0']
    #allocation3 [shape = 's32[2]{0}', space=sflag, size = 0x8, scoped, tag = 'scoped memory for tpu_custom_call.1']
    #allocation4 [shape = 's32[2]{0}', space=sflag, size = 0x8, scoped, tag = 'scoped memory for tpu_custom_call.1']
    #allocation5 [shape = 'u8[262144]{0}', space=vmem, size = 0x40000, scoped, tag = 'output window, operand 0']
    %10 = vsyncpa [#allocation3], 0
    %s11 = scalar_lea.sflag [#allocation3], 1
    %12 = vsyncpa %s11, 0
    %13 = vsyncpa [#allocation4], 0
    %s14 = scalar_lea.sflag [#allocation4], 1
    %15 = vsyncpa %s14, 0
    loop: start=0, step=1, limit=4
    $region2: #{tpu_custom_call.1} parent=1 // loop_pre_header
      _
    $region3: #{tpu_custom_call.1} parent=1 // loop_header
      %s17 = sphi 0, %s21
      %p18 = scmp.ge.s32.totalorder %s17, 4
      %s27 = sphi 0, %s29
      %s30 = sphi 0, %s27
      %s31 = sphi 0, %s30
      %s47 = sphi 0, %s31
      %s51 = sphi 0, %s51
      %s53 = sphi 0, %s51
      %s54 = sphi 0, %s53
      %s68 = sphi 0, %s54
      %s72 = sphi 0, %s72
      %s74 = sphi 0, %s72
      %s75 = sphi 0, %s74
      %s89 = sphi 0, %s75
      %s93 = sphi 0, %s93
      %s95 = sphi 0, %s93
      %s96 = sphi 0, %s95
      %s110 = sphi 0, %s96
      %s114 = sphi 0, %s114
      %s116 = sphi 0, %s114
      %s117 = sphi 0, %s116
      %s131 = sphi 0, %s117
      %s137 = sphi 0, %s139
      %s140 = sphi 0, %s137
      %s141 = sphi 0, %s140
      %s157 = sphi 0, %s141
    $region4: #{tpu_custom_call.1} parent=1 // loop_header_branch
      %20 = sbr.rel (%p18) target = $region8
    $region5: #{tpu_custom_call.1} parent=1 // loop_body
      %s22 = ssub.s32 %s17, 1
      %s23 = ssub.s32 %s17, 2
      %s24 = sadd.s32 %s17, 1
      %s25 = ssub.s32 %s17, %s24
      %p26 = scmp.eq.s32.totalorder %s25, 0
      %s28 = sadd.s32 %s27, 1
      %s29 = scalar_select %p26, %s27, %s28
      %p32 = pneg %p26
      %p33 = scmp.eq.s32.totalorder %s17, 1
      %p34 = por %p32, %p33
      %p35 = scmp.ne.s32.totalorder %s27, %s30
      %p36 = scmp.eq.s32.totalorder %s17, 0
      %p37 = por %p35, %p36
      %p38 = scmp.ne.s32.totalorder %s27, %s30
      %p39 = scmp.eq.s32.totalorder %s22, 1
      %p40 = por %p38, %p39
      %p41 = scmp.ne.s32.totalorder %s30, %s31
      %p42 = scmp.eq.s32.totalorder %s22, 0
      %p43 = por %p41, %p42
      %p44 = scmp.ne.s32.totalorder %s30, %s31
      %p45 = scmp.eq.s32.totalorder %s23, 1
      %p46 = por %p44, %p45
      %p48 = scmp.ne.s32.totalorder %s31, %s47
      %p49 = scmp.eq.s32.totalorder %s23, 0
      %p50 = por %p48, %p49
      %s52 = sadd.s32 %s51, 1
      %p55 = scmp.eq.s32.totalorder %s17, 1
      %p56 = scmp.ne.s32.totalorder %s51, %s53
      %p57 = scmp.eq.s32.totalorder %s17, 0
      %p58 = por %p56, %p57
      %p59 = scmp.ne.s32.totalorder %s51, %s53
      %p60 = scmp.eq.s32.totalorder %s22, 1
      %p61 = por %p59, %p60
      %p62 = scmp.ne.s32.totalorder %s53, %s54
      %p63 = scmp.eq.s32.totalorder %s22, 0
      %p64 = por %p62, %p63
      %p65 = scmp.ne.s32.totalorder %s53, %s54
      %p66 = scmp.eq.s32.totalorder %s23, 1
      %p67 = por %p65, %p66
      %p69 = scmp.ne.s32.totalorder %s54, %s68
      %p70 = scmp.eq.s32.totalorder %s23, 0
      %p71 = por %p69, %p70
      %s73 = sadd.s32 %s72, 1
      %p76 = scmp.eq.s32.totalorder %s17, 1
      %p77 = scmp.ne.s32.totalorder %s72, %s74
      %p78 = scmp.eq.s32.totalorder %s17, 0
      %p79 = por %p77, %p78
      %p80 = scmp.ne.s32.totalorder %s72, %s74
      %p81 = scmp.eq.s32.totalorder %s22, 1
      %p82 = por %p80, %p81
      %p83 = scmp.ne.s32.totalorder %s74, %s75
      %p84 = scmp.eq.s32.totalorder %s22, 0
      %p85 = por %p83, %p84
      %p86 = scmp.ne.s32.totalorder %s74, %s75
      %p87 = scmp.eq.s32.totalorder %s23, 1
      %p88 = por %p86, %p87
      %p90 = scmp.ne.s32.totalorder %s75, %s89
      %p91 = scmp.eq.s32.totalorder %s23, 0
      %p92 = por %p90, %p91
      %s94 = sadd.s32 %s93, 1
      %p97 = scmp.eq.s32.totalorder %s17, 1
      %p98 = scmp.ne.s32.totalorder %s93, %s95
      %p99 = scmp.eq.s32.totalorder %s17, 0
      %p100 = por %p98, %p99
      %p101 = scmp.ne.s32.totalorder %s93, %s95
      %p102 = scmp.eq.s32.totalorder %s22, 1
      %p103 = por %p101, %p102
      %p104 = scmp.ne.s32.totalorder %s95, %s96
      %p105 = scmp.eq.s32.totalorder %s22, 0
      %p106 = por %p104, %p105
      %p107 = scmp.ne.s32.totalorder %s95, %s96
      %p108 = scmp.eq.s32.totalorder %s23, 1
      %p109 = por %p107, %p108
      %p111 = scmp.ne.s32.totalorder %s96, %s110
      %p112 = scmp.eq.s32.totalorder %s23, 0
      %p113 = por %p111, %p112
      %s115 = sadd.s32 %s114, 1
      %p118 = scmp.eq.s32.totalorder %s17, 1
      %p119 = scmp.ne.s32.totalorder %s114, %s116
      %p120 = scmp.eq.s32.totalorder %s17, 0
      %p121 = por %p119, %p120
      %p122 = scmp.ne.s32.totalorder %s114, %s116
      %p123 = scmp.eq.s32.totalorder %s22, 1
      %p124 = por %p122, %p123
      %p125 = scmp.ne.s32.totalorder %s116, %s117
      %p126 = scmp.eq.s32.totalorder %s22, 0
      %p127 = por %p125, %p126
      %p128 = scmp.ne.s32.totalorder %s116, %s117
      %p129 = scmp.eq.s32.totalorder %s23, 1
      %p130 = por %p128, %p129
      %p132 = scmp.ne.s32.totalorder %s117, %s131
      %p133 = scmp.eq.s32.totalorder %s23, 0
      %p134 = por %p132, %p133
      %s135 = ssub.s32 %s17, %s24
      %p136 = scmp.eq.s32.totalorder %s135, 0
      %s138 = sadd.s32 %s137, 1
      %s139 = scalar_select %p136, %s137, %s138
      %p142 = pneg %p136
      %p143 = scmp.eq.s32.totalorder %s17, 1
      %p144 = por %p142, %p143
      %p145 = scmp.ne.s32.totalorder %s137, %s140
      %p146 = scmp.eq.s32.totalorder %s17, 0
      %p147 = por %p145, %p146
      %p148 = scmp.ne.s32.totalorder %s137, %s140
      %p149 = scmp.eq.s32.totalorder %s22, 1
      %p150 = por %p148, %p149
      %p151 = scmp.ne.s32.totalorder %s140, %s141
      %p152 = scmp.eq.s32.totalorder %s22, 0
      %p153 = por %p151, %p152
      %p154 = scmp.ne.s32.totalorder %s140, %s141
      %p155 = scmp.eq.s32.totalorder %s23, 1
      %p156 = por %p154, %p155
      %p158 = scmp.ne.s32.totalorder %s141, %s157
      %p159 = scmp.eq.s32.totalorder %s23, 0
      %p160 = por %p158, %p159
      %p161 = scmp.le.s32.totalorder 1, %s17
      %p162 = scmp.lt.s32.totalorder %s17, 3
      %p163 = pnand %p161, %p162
      %p164 = pneg %p163
      // Predicated region
      $region9: #{tpu_custom_call.1} parent=5 // pred_check
        _
      $region10: #{tpu_custom_call.1} parent=5 // pred_check_branch
        %166 = sbr.rel (%p163) target = $region12
      $region11: #{tpu_custom_call.1} parent=5 // pred_region
        %s167 = ssub.s32 %s17, 1
        // Predicated region
        $region13: #{tpu_custom_call.1} parent=11 // pred_check
          %p168 = pneg %p64
        $region14: #{tpu_custom_call.1} parent=11 // pred_check_branch
          %170 = sbr.rel (%p168) target = $region16
        $region15: #{tpu_custom_call.1} parent=11 // pred_region
          _
        $region16: #{tpu_custom_call.1} parent=11 // pred_fallthru
          _
        // Predicated region
        $region17: #{tpu_custom_call.1} parent=11 // pred_check
          %p171 = pneg %p85
        $region18: #{tpu_custom_call.1} parent=11 // pred_check_branch
          %173 = sbr.rel (%p171) target = $region20
        $region19: #{tpu_custom_call.1} parent=11 // pred_region
          _
        $region20: #{tpu_custom_call.1} parent=11 // pred_fallthru
          _
        // Predicated region
        $region21: #{tpu_custom_call.1} parent=11 // pred_check
          %p174 = pneg %p106
        $region22: #{tpu_custom_call.1} parent=11 // pred_check_branch
          %176 = sbr.rel (%p174) target = $region24
        $region23: #{tpu_custom_call.1} parent=11 // pred_region
          _
        $region24: #{tpu_custom_call.1} parent=11 // pred_fallthru
          _
        // Predicated region
        $region25: #{tpu_custom_call.1} parent=11 // pred_check
          %p177 = pneg %p127
        $region26: #{tpu_custom_call.1} parent=11 // pred_check_branch
          %179 = sbr.rel (%p177) target = $region28
        $region27: #{tpu_custom_call.1} parent=11 // pred_region
          _
        $region28: #{tpu_custom_call.1} parent=11 // pred_fallthru
          _
      $region12: #{tpu_custom_call.1} parent=5 // pred_fallthru
        _
      %p180 = scmp.lt.s32.totalorder %s17, 2
      // Predicated region
      $region29: #{tpu_custom_call.1} parent=5 // pred_check
        %p181 = pneg %p180
      $region30: #{tpu_custom_call.1} parent=5 // pred_check_branch
        %183 = sbr.rel (%p181) target = $region32
      $region31: #{tpu_custom_call.1} parent=5 // pred_region
        // Predicated region
        $region33: #{tpu_custom_call.1} parent=31 // pred_check
          %p184 = pneg %p37
        $region34: #{tpu_custom_call.1} parent=31 // pred_check_branch
          %186 = sbr.rel (%p184) target = $region36
        $region35: #{tpu_custom_call.1} parent=31 // pred_region
          %s187 = sand.u32 %s27, 1
          %s188 = scalar_lea.sflag [#allocation3], %s187
          %s189 = sand.u32 %s27, 1
          %s190 = smul.addr %s189, 256
          %s191 = scalar_lea.vmem [#allocation2], %s190
          %s193 = ssub.s32 4096, 4096
          %194 = vsyncadd %s188, %s193
          %s195 = smul.addr %s17, 32
          %s196 = smul.addr %s195, 128
          %s197 = scalar_lea.hbm %s0, %s196
          %s198 = sshll.u32 %s191, 4
          %s199 = int_to_ptr.vmem [resolvable:$true] %s198
          %204 = dma.hbm_to_vmem [thread:$0]  %s197, 4096, %s199, %s188, 1024, 1024, 64
        $region36: #{tpu_custom_call.1} parent=31 // pred_fallthru
          _
      $region32: #{tpu_custom_call.1} parent=5 // pred_fallthru
        _
      %p205 = scmp.le.s32.totalorder 1, %s17
      %p206 = scmp.lt.s32.totalorder %s17, 3
      %p207 = pnand %p205, %p206
      %p208 = pneg %p207
      // Predicated region
      $region37: #{tpu_custom_call.1} parent=5 // pred_check
        _
      $region38: #{tpu_custom_call.1} parent=5 // pred_check_branch
        %210 = sbr.rel (%p207) target = $region40
      $region39: #{tpu_custom_call.1} parent=5 // pred_region
        %s211 = ssub.s32 %s17, 1
        %s212 = sand.u32 %s30, 1
        %s213 = scalar_lea.sflag [#allocation3], %s212
        %s214 = sand.u32 %s30, 1
        %s215 = smul.addr %s214, 256
        %s216 = scalar_lea.vmem [#allocation2], %s215
        // Predicated region
        $region41: #{tpu_custom_call.1} parent=39 // pred_check
          %p217 = pneg %p43
        $region42: #{tpu_custom_call.1} parent=39 // pred_check_branch
          %219 = sbr.rel (%p217) target = $region44
        $region43: #{tpu_custom_call.1} parent=39 // pred_region
          %220 = dma.done %s213, 4096
        $region44: #{tpu_custom_call.1} parent=39 // pred_fallthru
          _
        %s221 = sand.u32 %s30, 1
        %s222 = scalar_lea.sflag [#allocation3], %s221
        %s223 = sand.u32 %s30, 1
        %s224 = smul.addr %s223, 256
        %s225 = scalar_lea.vmem [#allocation2], %s224
        %p226 = pneg %p43
        %p227 = pneg %p40
        %p228 = pneg %p64
        %p229 = pneg %p61
        %p230 = pneg %p85
        %p231 = pneg %p82
        %p232 = pneg %p106
        %p233 = pneg %p103
        %p234 = pneg %p127
        %p235 = pneg %p124
        %p236 = pneg %p153
        %p237 = pneg %p150
        %s238 = sand.u32 %s140, 1
        %s239 = scalar_lea.sflag [#allocation4], %s238
        %s240 = sand.u32 %s140, 1
        %s241 = smul.addr %s240, 256
        %s242 = scalar_lea.vmem [#allocation5], %s241
        %v243 = vld [vmem:[%s216] sm:$0xff]
        %v244 = vld [vmem:[%s216 + $0x40] sm:$0xff]
        %v245 = vld [vmem:[%s216 + $0x80] sm:$0xff]
        %v246 = vld [vmem:[%s216 + $0xc0] sm:$0xff]
        %v247 = vadd.f32 %v243, 0.0
        %v248 = vadd.f32 %v244, 0.0
        %v249 = vadd.f32 %v245, 0.0
        %v250 = vadd.f32 %v246, 0.0
        %s251 = scalar_lea.vmem %s216, 8 [#allocation2]
        %v252 = vld [vmem:[%s251] sm:$0xff]
        %v253 = vld [vmem:[%s251 + $0x40] sm:$0xff]
        %v254 = vld [vmem:[%s251 + $0x80] sm:$0xff]
        %v255 = vld [vmem:[%s251 + $0xc0] sm:$0xff]
        %v256 = vadd.f32 %v247, %v252
        %v257 = vadd.f32 %v248, %v253
        %v258 = vadd.f32 %v249, %v254
        %v259 = vadd.f32 %v250, %v255
        %s260 = scalar_lea.vmem %s216, 16 [#allocation2]
        %v261 = vld [vmem:[%s260] sm:$0xff]
        %v262 = vld [vmem:[%s260 + $0x40] sm:$0xff]
        %v263 = vld [vmem:[%s260 + $0x80] sm:$0xff]
        %v264 = vld [vmem:[%s260 + $0xc0] sm:$0xff]
        %v265 = vadd.f32 %v256, %v261
        %v266 = vadd.f32 %v257, %v262
        %v267 = vadd.f32 %v258, %v263
        %v268 = vadd.f32 %v259, %v264
        %s269 = scalar_lea.vmem %s216, 24 [#allocation2]
        %v270 = vld [vmem:[%s269] sm:$0xff]
        %v271 = vld [vmem:[%s269 + $0x40] sm:$0xff]
        %v272 = vld [vmem:[%s269 + $0x80] sm:$0xff]
        %v273 = vld [vmem:[%s269 + $0xc0] sm:$0xff]
        %v274 = vadd.f32 %v265, %v270
        %v275 = vadd.f32 %v266, %v271
        %v276 = vadd.f32 %v267, %v272
        %v277 = vadd.f32 %v268, %v273
        %s278 = scalar_lea.vmem %s216, 32 [#allocation2]
        %v279 = vld [vmem:[%s278] sm:$0xff]
        %v280 = vld [vmem:[%s278 + $0x40] sm:$0xff]
        %v281 = vld [vmem:[%s278 + $0x80] sm:$0xff]
        %v282 = vld [vmem:[%s278 + $0xc0] sm:$0xff]
        %v283 = vadd.f32 %v274, %v279
        %v284 = vadd.f32 %v275, %v280
        %v285 = vadd.f32 %v276, %v281
        %v286 = vadd.f32 %v277, %v282
        %s287 = scalar_lea.vmem %s216, 40 [#allocation2]
        %v288 = vld [vmem:[%s287] sm:$0xff]
        %v289 = vld [vmem:[%s287 + $0x40] sm:$0xff]
        %v290 = vld [vmem:[%s287 + $0x80] sm:$0xff]
        %v291 = vld [vmem:[%s287 + $0xc0] sm:$0xff]
        %v292 = vadd.f32 %v283, %v288
        %v293 = vadd.f32 %v284, %v289
        %v294 = vadd.f32 %v285, %v290
        %v295 = vadd.f32 %v286, %v291
        %s296 = scalar_lea.vmem %s216, 48 [#allocation2]
        %v297 = vld [vmem:[%s296] sm:$0xff]
        %v298 = vld [vmem:[%s296 + $0x40] sm:$0xff]
        %v299 = vld [vmem:[%s296 + $0x80] sm:$0xff]
        %v300 = vld [vmem:[%s296 + $0xc0] sm:$0xff]
        %v301 = vadd.f32 %v292, %v297
        %v302 = vadd.f32 %v293, %v298
        %v303 = vadd.f32 %v294, %v299
        %v304 = vadd.f32 %v295, %v300
        %s305 = scalar_lea.vmem %s216, 56 [#allocation2]
        %v306 = vld [vmem:[%s305] sm:$0xff]
        %v307 = vld [vmem:[%s305 + $0x40] sm:$0xff]
        %v308 = vld [vmem:[%s305 + $0x80] sm:$0xff]
        %v309 = vld [vmem:[%s305 + $0xc0] sm:$0xff]
        %v310 = vadd.f32 %v301, %v306
        %v311 = vadd.f32 %v302, %v307
        %v312 = vadd.f32 %v303, %v308
        %v313 = vadd.f32 %v304, %v309
        %314 = vadd.xlane.f32.xlu0 %v310
        %v315 = vpop.xlane.xlu0 %314
        %316 = vadd.xlane.f32.xlu0 %v311
        %v317 = vpop.xlane.xlu0 %316
        %318 = vadd.xlane.f32.xlu0 %v312
        %v319 = vpop.xlane.xlu0 %318
        %320 = vadd.xlane.f32.xlu0 %v313
        %v321 = vpop.xlane.xlu0 %320
        %v322 = vadd.f32 %v315, 0.0
        %v323 = vadd.f32 %v317, 0.0
        %v324 = vadd.f32 %v319, 0.0
        %v325 = vadd.f32 %v321, 0.0
        %v326 = vmul.f32 %v322, 0.0009765625
        %v327 = vmul.f32 %v323, 0.0009765625
        %v328 = vmul.f32 %v324, 0.0009765625
        %v329 = vmul.f32 %v325, 0.0009765625
        %v330 = vld [vmem:[%s1] sm:$0xff]
        %v331 = vld [vmem:[%s1 + $0x8] sm:$0xff]
        %v332 = vld [vmem:[%s1 + $0x10] sm:$0xff]
        %v333 = vld [vmem:[%s1 + $0x18] sm:$0xff]
        %v334 = vld [vmem:[%s2] sm:$0x1]
        %v339 = vlaneseq
        %v340 = vand.u32 %v339, 127
        %v341 = vlaneseq
        %v342 = vshrl.u32 %v341, 7
        %v343 = vsub.s32 %v340, %v342
        %v344 = vrot.slane %v326, %v343
        %v345 = vadd.s32 %v340, 4294967288
        %v346 = vlaneseq
        %v347 = vshrl.u32 %v346, 7
        %v348 = vsub.s32 %v345, %v347
        %v349 = vrot.slane %v327, %v348
        %vm350 = vcmask 130112
        %v351 = vsel %vm350, %v349, %v344
        %v352 = vadd.s32 %v340, 4294967280
        %v353 = vlaneseq
        %v354 = vshrl.u32 %v353, 7
        %v355 = vsub.s32 %v352, %v354
        %v356 = vrot.slane %v328, %v355
        %vm357 = vcmask 195712
        %v358 = vsel %vm357, %v356, %v351
        %v359 = vadd.s32 %v340, 4294967272
        %v360 = vlaneseq
        %v361 = vshrl.u32 %v360, 7
        %v362 = vsub.s32 %v359, %v361
        %v363 = vrot.slane %v329, %v362
        %vm364 = vcmask 261312
        %v365 = vsel %vm364, %v363, %v358
        %vm366 = vcmask 261120
        %v367 = vsel %vm366, %v365, 0
        %369 = vmatprep.subr.mxu0 0.0
        %370 = vmatpush1.msra.mxu0 %v330
        %371 = vmatprep.subr.mxu0 0.0
        %372 = vmatpush1.msra.mxu0 %v331
        %373 = vmatprep.subr.mxu0 0.0
        %374 = vmatpush1.msra.mxu0 %v332
        %375 = vmatprep.subr.mxu0 0.0
        %376 = vmatpush1.msra.mxu0 %v333
        %377 = vmatprep.subr.mxu0 0.0
        %378 = vmatpush1.msra.mxu0 0.0
        %379 = vmatprep.subr.mxu0 0.0
        %380 = vmatpush1.msra.mxu0 0.0
        %381 = vmatprep.subr.mxu0 0.0
        %382 = vmatpush1.msra.mxu0 0.0
        %383 = vmatprep.subr.mxu0 0.0
        %384 = vmatpush1.msra.mxu0 0.0
        %385 = vmatprep.subr.mxu0 0.0
        %386 = vmatpush1.msra.mxu0 0.0
        %387 = vmatprep.subr.mxu0 0.0
        %388 = vmatpush1.msra.mxu0 0.0
        %389 = vmatprep.subr.mxu0 0.0
        %390 = vmatpush1.msra.mxu0 0.0
        %391 = vmatprep.subr.mxu0 0.0
        %392 = vmatpush1.msra.mxu0 0.0
        %393 = vmatprep.subr.mxu0 0.0
        %394 = vmatpush1.msra.mxu0 0.0
        %395 = vmatprep.subr.mxu0 0.0
        %396 = vmatpush1.msra.mxu0 0.0
        %397 = vmatprep.subr.mxu0 0.0
        %398 = vmatpush1.msra.mxu0 0.0
        %399 = vmatprep.subr.mxu0 0.0
        %400 = vmatpush1.msra.mxu0 0.0
        %401 = vmatprep.subr.mxu0 0.0
        %402 = vmatpush1.msra.mxu0 0.0
        %403 = vmatprep.subr.mxu0 0.0
        %404 = vmatpush1.msra.mxu0 0.0
        %405 = vmatprep.subr.mxu0 0.0
        %406 = vmatpush1.msra.mxu0 0.0
        %407 = vmatprep.subr.mxu0 0.0
        %408 = vmatpush1.msra.mxu0 0.0
        %409 = vmatprep.subr.mxu0 0.0
        %410 = vmatpush1.msra.mxu0 0.0
        %411 = vmatprep.subr.mxu0 0.0
        %412 = vmatpush1.msra.mxu0 0.0
        %413 = vmatprep.subr.mxu0 0.0
        %414 = vmatpush1.msra.mxu0 0.0
        %415 = vmatprep.subr.mxu0 0.0
        %416 = vmatpush1.msra.mxu0 0.0
        %417 = vmatprep.subr.mxu0 0.0
        %418 = vmatpush1.msra.mxu0 0.0
        %419 = vmatprep.subr.mxu0 0.0
        %420 = vmatpush1.msra.mxu0 0.0
        %421 = vmatprep.subr.mxu0 0.0
        %422 = vmatpush1.msra.mxu0 0.0
        %423 = vmatprep.subr.mxu0 0.0
        %424 = vmatpush1.msra.mxu0 0.0
        %425 = vmatprep.subr.mxu0 0.0
        %426 = vmatpush1.msra.mxu0 0.0
        %427 = vmatprep.subr.mxu0 0.0
        %428 = vmatpush1.msra.mxu0 0.0
        %429 = vmatprep.subr.mxu0 0.0
        %430 = vmatpush1.msra.mxu0 0.0
        %431 = vmatprep.subr.mxu0 0.0
        %432 = vmatpush1.msra.mxu0 0.0
        %433 = vmatprep.mubr.f32.mxu0 0.0
        %434 = vmatmul.mubr.f32.gmra.mrb[0].mxu0 %v367
        %v435 = vpop.f32.mrb[0].mxu0
        %v436 = vadd.f32 %v334, %v435
        %v437 = vpop.f32.mrb[0].mxu0
        %438 = vdwg.mxu0
        %v439 = vmax.f32 %v436, 0.0
        %v440 = vld [vmem:[%s3] sm:$0x3]
        %v441 = vld [vmem:[%s4] sm:$0x1]
        %vm442 = vcmask 15360
        %v444 = vsel %vm442, %v439, 0
        %vm446 = vcmask 1041408
        %v448 = vsel %vm446, %v440, 0
        %450 = vmatprep.subr.mxu0 0.0
        %451 = vmatpush1.msra.mxu0 %v448
        %452 = vmatprep.subr.mxu0 0.0
        %453 = vmatpush1.msra.mxu0 0.0
        %454 = vmatprep.subr.mxu0 0.0
        %455 = vmatpush1.msra.mxu0 0.0
        %456 = vmatprep.subr.mxu0 0.0
        %457 = vmatpush1.msra.mxu0 0.0
        %458 = vmatprep.subr.mxu0 0.0
        %459 = vmatpush1.msra.mxu0 0.0
        %460 = vmatprep.subr.mxu0 0.0
        %461 = vmatpush1.msra.mxu0 0.0
        %462 = vmatprep.subr.mxu0 0.0
        %463 = vmatpush1.msra.mxu0 0.0
        %464 = vmatprep.subr.mxu0 0.0
        %465 = vmatpush1.msra.mxu0 0.0
        %466 = vmatprep.subr.mxu0 0.0
        %467 = vmatpush1.msra.mxu0 0.0
        %468 = vmatprep.subr.mxu0 0.0
        %469 = vmatpush1.msra.mxu0 0.0
        %470 = vmatprep.subr.mxu0 0.0
        %471 = vmatpush1.msra.mxu0 0.0
        %472 = vmatprep.subr.mxu0 0.0
        %473 = vmatpush1.msra.mxu0 0.0
        %474 = vmatprep.subr.mxu0 0.0
        %475 = vmatpush1.msra.mxu0 0.0
        %476 = vmatprep.subr.mxu0 0.0
        %477 = vmatpush1.msra.mxu0 0.0
        %478 = vmatprep.subr.mxu0 0.0
        %479 = vmatpush1.msra.mxu0 0.0
        %480 = vmatprep.subr.mxu0 0.0
        %481 = vmatpush1.msra.mxu0 0.0
        %482 = vmatprep.subr.mxu0 0.0
        %483 = vmatpush1.msra.mxu0 0.0
        %484 = vmatprep.subr.mxu0 0.0
        %485 = vmatpush1.msra.mxu0 0.0
        %486 = vmatprep.subr.mxu0 0.0
        %487 = vmatpush1.msra.mxu0 0.0
        %488 = vmatprep.subr.mxu0 0.0
        %489 = vmatpush1.msra.mxu0 0.0
        %490 = vmatprep.subr.mxu0 0.0
        %491 = vmatpush1.msra.mxu0 0.0
        %492 = vmatprep.subr.mxu0 0.0
        %493 = vmatpush1.msra.mxu0 0.0
        %494 = vmatprep.subr.mxu0 0.0
        %495 = vmatpush1.msra.mxu0 0.0
        %496 = vmatprep.subr.mxu0 0.0
        %497 = vmatpush1.msra.mxu0 0.0
        %498 = vmatprep.subr.mxu0 0.0
        %499 = vmatpush1.msra.mxu0 0.0
        %500 = vmatprep.subr.mxu0 0.0
        %501 = vmatpush1.msra.mxu0 0.0
        %502 = vmatprep.subr.mxu0 0.0
        %503 = vmatpush1.msra.mxu0 0.0
        %504 = vmatprep.subr.mxu0 0.0
        %505 = vmatpush1.msra.mxu0 0.0
        %506 = vmatprep.subr.mxu0 0.0
        %507 = vmatpush1.msra.mxu0 0.0
        %508 = vmatprep.subr.mxu0 0.0
        %509 = vmatpush1.msra.mxu0 0.0
        %510 = vmatprep.subr.mxu0 0.0
        %511 = vmatpush1.msra.mxu0 0.0
        %512 = vmatprep.subr.mxu0 0.0
        %513 = vmatpush1.msra.mxu0 0.0
        %514 = vmatprep.mubr.f32.mxu0 0.0
        %515 = vmatmul.mubr.f32.gmra.mrb[0].mxu0 %v444
        %v516 = vpop.f32.mrb[0].mxu0
        %v517 = vadd.f32 %v441, %v516
        %v518 = vpop.f32.mrb[0].mxu0
        %519 = vdwg.mxu0
        %v520 = vxor.u32 %v517, 2147483648
        %v521 = vmul.f32 %v520, 1.442695
        %v522 = vpow.pop %v521
        %v523 = vadd.f32 %v522, 1.0
        %v524 = vrcp.pop %v523
        %v525 = vmul.f32 1.0, %v524
        %v526 = vlaneseq
        %v527 = vshrl.u32 %v526, 7
        %v528 = vsub.s32 0, %v527
        %v529 = vrot.slane %v525, %v528
        %531 = vbcast.lane.b32.xlu0 %v529, 256
        %v532 = vpop.permute.xlu0 %531
        %s534 = sor.u32 256, 8
        %535 = vbcast.lane.b32.xlu0 %v529, %s534
        %v536 = vpop.permute.xlu0 %535
        %s538 = sor.u32 256, 16
        %539 = vbcast.lane.b32.xlu0 %v529, %s538
        %v540 = vpop.permute.xlu0 %539
        %s542 = sor.u32 256, 24
        %543 = vbcast.lane.b32.xlu0 %v529, %s542
        %v544 = vpop.permute.xlu0 %543
        %v545 = vld [vmem:[%s216] sm:$0xff]
        %v546 = vld [vmem:[%s216 + $0x8] sm:$0xff]
        %v547 = vld [vmem:[%s216 + $0x10] sm:$0xff]
        %v548 = vld [vmem:[%s216 + $0x18] sm:$0xff]
        %v549 = vld [vmem:[%s216 + $0x20] sm:$0xff]
        %v550 = vld [vmem:[%s216 + $0x28] sm:$0xff]
        %v551 = vld [vmem:[%s216 + $0x30] sm:$0xff]
        %v552 = vld [vmem:[%s216 + $0x38] sm:$0xff]
        %v553 = vld [vmem:[%s216 + $0x40] sm:$0xff]
        %v554 = vld [vmem:[%s216 + $0x48] sm:$0xff]
        %v555 = vld [vmem:[%s216 + $0x50] sm:$0xff]
        %v556 = vld [vmem:[%s216 + $0x58] sm:$0xff]
        %v557 = vld [vmem:[%s216 + $0x60] sm:$0xff]
        %v558 = vld [vmem:[%s216 + $0x68] sm:$0xff]
        %v559 = vld [vmem:[%s216 + $0x70] sm:$0xff]
        %v560 = vld [vmem:[%s216 + $0x78] sm:$0xff]
        %v561 = vld [vmem:[%s216 + $0x80] sm:$0xff]
        %v562 = vld [vmem:[%s216 + $0x88] sm:$0xff]
        %v563 = vld [vmem:[%s216 + $0x90] sm:$0xff]
        %v564 = vld [vmem:[%s216 + $0x98] sm:$0xff]
        %v565 = vld [vmem:[%s216 + $0xa0] sm:$0xff]
        %v566 = vld [vmem:[%s216 + $0xa8] sm:$0xff]
        %v567 = vld [vmem:[%s216 + $0xb0] sm:$0xff]
        %v568 = vld [vmem:[%s216 + $0xb8] sm:$0xff]
        %v569 = vld [vmem:[%s216 + $0xc0] sm:$0xff]
        %v570 = vld [vmem:[%s216 + $0xc8] sm:$0xff]
        %v571 = vld [vmem:[%s216 + $0xd0] sm:$0xff]
        %v572 = vld [vmem:[%s216 + $0xd8] sm:$0xff]
        %v573 = vld [vmem:[%s216 + $0xe0] sm:$0xff]
        %v574 = vld [vmem:[%s216 + $0xe8] sm:$0xff]
        %v575 = vld [vmem:[%s216 + $0xf0] sm:$0xff]
        %v576 = vld [vmem:[%s216 + $0xf8] sm:$0xff]
        %v577 = vmul.f32 %v545, %v532
        %v578 = vmul.f32 %v546, %v532
        %v579 = vmul.f32 %v547, %v532
        %v580 = vmul.f32 %v548, %v532
        %v581 = vmul.f32 %v549, %v532
        %v582 = vmul.f32 %v550, %v532
        %v583 = vmul.f32 %v551, %v532
        %v584 = vmul.f32 %v552, %v532
        %v585 = vmul.f32 %v553, %v536
        %v586 = vmul.f32 %v554, %v536
        %v587 = vmul.f32 %v555, %v536
        %v588 = vmul.f32 %v556, %v536
        %v589 = vmul.f32 %v557, %v536
        %v590 = vmul.f32 %v558, %v536
        %v591 = vmul.f32 %v559, %v536
        %v592 = vmul.f32 %v560, %v536
        %v593 = vmul.f32 %v561, %v540
        %v594 = vmul.f32 %v562, %v540
        %v595 = vmul.f32 %v563, %v540
        %v596 = vmul.f32 %v564, %v540
        %v597 = vmul.f32 %v565, %v540
        %v598 = vmul.f32 %v566, %v540
        %v599 = vmul.f32 %v567, %v540
        %v600 = vmul.f32 %v568, %v540
        %v601 = vmul.f32 %v569, %v544
        %v602 = vmul.f32 %v570, %v544
        %v603 = vmul.f32 %v571, %v544
        %v604 = vmul.f32 %v572, %v544
        %v605 = vmul.f32 %v573, %v544
        %v606 = vmul.f32 %v574, %v544
        %v607 = vmul.f32 %v575, %v544
        %v608 = vmul.f32 %v576, %v544
        %609 = vst [vmem:[%s242] sm:$0xff] %v577
        %610 = vst [vmem:[%s242 + $0x8] sm:$0xff] %v578
        %611 = vst [vmem:[%s242 + $0x10] sm:$0xff] %v579
        %612 = vst [vmem:[%s242 + $0x18] sm:$0xff] %v580
        %613 = vst [vmem:[%s242 + $0x20] sm:$0xff] %v581
        %614 = vst [vmem:[%s242 + $0x28] sm:$0xff] %v582
        %615 = vst [vmem:[%s242 + $0x30] sm:$0xff] %v583
        %616 = vst [vmem:[%s242 + $0x38] sm:$0xff] %v584
        %617 = vst [vmem:[%s242 + $0x40] sm:$0xff] %v585
        %618 = vst [vmem:[%s242 + $0x48] sm:$0xff] %v586
        %619 = vst [vmem:[%s242 + $0x50] sm:$0xff] %v587
        %620 = vst [vmem:[%s242 + $0x58] sm:$0xff] %v588
        %621 = vst [vmem:[%s242 + $0x60] sm:$0xff] %v589
        %622 = vst [vmem:[%s242 + $0x68] sm:$0xff] %v590
        %623 = vst [vmem:[%s242 + $0x70] sm:$0xff] %v591
        %624 = vst [vmem:[%s242 + $0x78] sm:$0xff] %v592
        %625 = vst [vmem:[%s242 + $0x80] sm:$0xff] %v593
        %626 = vst [vmem:[%s242 + $0x88] sm:$0xff] %v594
        %627 = vst [vmem:[%s242 + $0x90] sm:$0xff] %v595
        %628 = vst [vmem:[%s242 + $0x98] sm:$0xff] %v596
        %629 = vst [vmem:[%s242 + $0xa0] sm:$0xff] %v597
        %630 = vst [vmem:[%s242 + $0xa8] sm:$0xff] %v598
        %631 = vst [vmem:[%s242 + $0xb0] sm:$0xff] %v599
        %632 = vst [vmem:[%s242 + $0xb8] sm:$0xff] %v600
        %633 = vst [vmem:[%s242 + $0xc0] sm:$0xff] %v601
        %634 = vst [vmem:[%s242 + $0xc8] sm:$0xff] %v602
        %635 = vst [vmem:[%s242 + $0xd0] sm:$0xff] %v603
        %636 = vst [vmem:[%s242 + $0xd8] sm:$0xff] %v604
        %637 = vst [vmem:[%s242 + $0xe0] sm:$0xff] %v605
        %638 = vst [vmem:[%s242 + $0xe8] sm:$0xff] %v606
        %639 = vst [vmem:[%s242 + $0xf0] sm:$0xff] %v607
        %640 = vst [vmem:[%s242 + $0xf8] sm:$0xff] %v608
        %s641 = sand.u32 %s140, 1
        %s642 = scalar_lea.sflag [#allocation4], %s641
        %s643 = sand.u32 %s140, 1
        %s644 = smul.addr %s643, 256
        %s645 = scalar_lea.vmem [#allocation5], %s644
        // Predicated region
        $region45: #{tpu_custom_call.1} parent=39 // pred_check
          %p646 = pneg %p150
        $region46: #{tpu_custom_call.1} parent=39 // pred_check_branch
          %648 = sbr.rel (%p646) target = $region48
        $region47: #{tpu_custom_call.1} parent=39 // pred_region
          %s650 = ssub.s32 4096, 4096
          %651 = vsyncadd %s642, %s650
          %s652 = smul.addr %s22, 32
          %s653 = smul.addr %s652, 128
          %s654 = scalar_lea.hbm %s5, %s653
          %s655 = sshll.u32 %s645, 4
          %s656 = int_to_ptr.vmem [resolvable:$true] %s655
          %661 = dma.vmem_to_hbm [thread:$0]  %s656, 4096, %s654, %s642, 1024, 1024, 64
        $region48: #{tpu_custom_call.1} parent=39 // pred_fallthru
          _
      $region40: #{tpu_custom_call.1} parent=5 // pred_fallthru
        _
      %p662 = scmp.le.s32.totalorder 2, %s17
      // Predicated region
      $region49: #{tpu_custom_call.1} parent=5 // pred_check
        %p663 = pneg %p662
      $region50: #{tpu_custom_call.1} parent=5 // pred_check_branch
        %665 = sbr.rel (%p663) target = $region52
      $region51: #{tpu_custom_call.1} parent=5 // pred_region
        %s666 = ssub.s32 %s17, 2
        // Predicated region
        $region53: #{tpu_custom_call.1} parent=51 // pred_check
          %p667 = pneg %p156
        $region54: #{tpu_custom_call.1} parent=51 // pred_check_branch
          %669 = sbr.rel (%p667) target = $region56
        $region55: #{tpu_custom_call.1} parent=51 // pred_region
          %s670 = sand.u32 %s141, 1
          %s671 = scalar_lea.sflag [#allocation4], %s670
          %s672 = sand.u32 %s141, 1
          %s673 = smul.addr %s672, 256
          %s674 = scalar_lea.vmem [#allocation5], %s673
          %675 = dma.done %s671, 4096
        $region56: #{tpu_custom_call.1} parent=51 // pred_fallthru
          _
      $region52: #{tpu_custom_call.1} parent=5 // pred_fallthru
        _
    $region6: #{tpu_custom_call.1} parent=1 // loop_footer
      %s21 = sadd.s32 1, %s17
    $region7: #{tpu_custom_call.1} parent=1 // loop_footer_branch
      %16 = sbr.rel target = $region3
    $region8: #{tpu_custom_call.1} parent=1 // loop_exit
      _
    %676 = vsyncpa [#allocation3], 1
    %s677 = scalar_lea.sflag [#allocation3], 1
    %678 = vsyncpa %s677, 1
    %679 = vsyncpa [#allocation4], 1
    %s680 = scalar_lea.sflag [#allocation4], 1
    %681 = vsyncpa %s680, 1

</llo_original>
